<compile_context>
chip_gen: v5e
topology: v5e:2x2
jax: 0.10.0
libtpu: 0.0.40
codegen_flags: <defaults>
</compile_context>

<pallas_src>
import functools

import jax
import jax.numpy as jnp
from jax.experimental import pallas as pl
from jax.experimental.pallas import tpu as pltpu


def _concat_pool_kernel(x_ref, mx_ref, av_ref, mx_acc, sm_acc, *, hw, need_mask):
    # x_ref: (TB, TL) tile of the flattened (rows=N*C, H*W) input.
    k = pl.program_id(1)

    @pl.when(k == 0)
    def _():
        mx_acc[...] = jnp.full_like(mx_acc, -jnp.inf)
        sm_acc[...] = jnp.zeros_like(sm_acc)

    x = x_ref[...].astype(jnp.float32)            # f32 accumulation (v5e-safe)
    if need_mask:
        tl = x.shape[-1]
        lane = jax.lax.broadcasted_iota(jnp.int32, x.shape, 1) + k * tl
        valid = lane < hw
        x_max = jnp.where(valid, x, -jnp.inf)
        x_sum = jnp.where(valid, x, 0.0)
    else:
        x_max = x
        x_sum = x

    mx_acc[...] = jnp.maximum(mx_acc[...], jnp.max(x_max, axis=-1, keepdims=True))
    sm_acc[...] = sm_acc[...] + jnp.sum(x_sum, axis=-1, keepdims=True)

    @pl.when(k == pl.num_programs(1) - 1)
    def _():
        mx_ref[...] = mx_acc[...].astype(mx_ref.dtype)
        av_ref[...] = (sm_acc[...] * (1.0 / hw)).astype(av_ref.dtype)


def _tile_sizes(rows, hw, itemsize, target_block_bytes=4 << 20):
    """Pick (TB rows, TL lanes, num_k lane-chunks) for a (rows, hw) input."""
    if hw * itemsize * 8 <= target_block_bytes:
        # Whole reduction axis fits in one block with at least 8 rows.
        tl = hw
        num_k = 1
        if rows <= 8:
            tb = rows                                   # full-dim block
        else:
            cap = max(8, (target_block_bytes // (hw * itemsize)) // 8 * 8)
            tb = min(cap, (rows // 8) * 8)              # multiple of 8, <= rows
    else:
        # Very large feature map: chunk H*W (lane axis) in multiples of 128.
        tl = max(128, (target_block_bytes // (8 * itemsize)) // 128 * 128)
        num_k = pl.cdiv(hw, tl)
        tb = rows if rows <= 8 else 8
    return tb, tl, num_k


def adaptive_concat_pool2d(x):
    """x: (N, C, H, W) -> (N, 2*C, 1, 1), matching
    torch.cat([AdaptiveMaxPool2d((1,1))(x), AdaptiveAvgPool2d((1,1))(x)], dim=1)."""
    N, C, H, W = x.shape
    rows, hw = N * C, H * W
    x2d = x.reshape(rows, hw)                # free metadata reshape in HBM
    itemsize = jnp.dtype(x.dtype).itemsize

    tb, tl, num_k = _tile_sizes(rows, hw, itemsize)
    need_mask = (num_k * tl) != hw

    kernel = functools.partial(_concat_pool_kernel, hw=hw, need_mask=need_mask)

    cost = pl.CostEstimate(
        flops=2 * rows * hw,
        transcendentals=0,
        bytes_accessed=rows * hw * itemsize + 2 * rows * itemsize,
    )

    mx, av = pl.pallas_call(
        kernel,
        out_shape=(jax.ShapeDtypeStruct((rows, 1), x.dtype),
                   jax.ShapeDtypeStruct((rows, 1), x.dtype)),
        grid_spec=pltpu.PrefetchScalarGridSpec(
            num_scalar_prefetch=0,
            grid=(pl.cdiv(rows, tb), num_k),
            in_specs=[pl.BlockSpec((tb, tl), lambda i, k: (i, k))],
            out_specs=[pl.BlockSpec((tb, 1), lambda i, k: (i, 0)),
                       pl.BlockSpec((tb, 1), lambda i, k: (i, 0))],
            scratch_shapes=[pltpu.VMEM((tb, 1), jnp.float32),
                            pltpu.VMEM((tb, 1), jnp.float32)],
        ),
        compiler_params=pltpu.CompilerParams(
            dimension_semantics=("parallel", "arbitrary"),
            vmem_limit_bytes=32 * 1024 * 1024,
        ),
        cost_estimate=cost,
    )(x2d)

    mx = mx.reshape(N, C, 1, 1)
    av = av.reshape(N, C, 1, 1)
    return jnp.concatenate([mx, av], axis=1)   # tiny XLA concat in the wrapper


if __name__ == "__main__":
    key = jax.random.PRNGKey(0)
    N, C, H, W = 2, 4, 16, 16
    x = jax.random.normal(key, (N, C, H, W), dtype=jnp.float32)

    out = adaptive_concat_pool2d(x)
    jax.block_until_ready(out)

    # Reference check in plain JAX (same semantics as the PyTorch module).
    ref = jnp.concatenate(
        [jnp.max(x, axis=(2, 3), keepdims=True),
         jnp.mean(x, axis=(2, 3), keepdims=True)],
        axis=1,
    )
    assert out.shape == (N, 2 * C, 1, 1), out.shape
    assert jnp.allclose(out, ref, atol=1e-5, rtol=1e-5), "mismatch vs reference"

    print("KERNEL_OK")
</pallas_src>

<mosaic_0001>
module attributes {stable_mosaic.version = 11 : i64} {
  func.func @_concat_pool_kernel(%arg0: i32, %arg1: i32, %arg2: memref<8x256xf32, #tpu.memory_space<vmem>>, %arg3: memref<8x1xf32, #tpu.memory_space<vmem>>, %arg4: memref<8x1xf32, #tpu.memory_space<vmem>>, %arg5: memref<8x1xf32, #tpu.memory_space<vmem>>, %arg6: memref<8x1xf32, #tpu.memory_space<vmem>>) attributes {dimension_semantics = [#tpu.dimension_semantics<parallel>, #tpu.dimension_semantics<arbitrary>], iteration_bounds = array<i64: 1, 1>, scalar_prefetch = 0 : i64, scratch_operands = 2 : i64, tpu.core_type = #tpu.core_type<tc>, window_params = [{transform_indices = @transform_0, window_bounds = array<i64: 8, 256>}, {transform_indices = @transform_1, window_bounds = array<i64: 8, 1>}, {transform_indices = @transform_2, window_bounds = array<i64: 8, 1>}]} {
    %c0_i32 = arith.constant 0 : i32
    %0 = arith.cmpi eq, %arg1, %c0_i32 : i32
    %1 = arith.extui %0 : i1 to i32
    %c0_i32_0 = arith.constant 0 : i32
    %2 = arith.cmpi ne, %1, %c0_i32_0 : i32
    scf.if %2 {
      %cst_13 = arith.constant 0xFF800000 : f32
      %17 = vector.broadcast %cst_13 : f32 to vector<8x1xf32>
      %c0_14 = arith.constant 0 : index
      %c0_15 = arith.constant 0 : index
      %18 = vector.load %arg5[%c0_14, %c0_15] : memref<8x1xf32, #tpu.memory_space<vmem>>, vector<8x1xf32>
      tpu.vector_store %arg5[%c0_14, %c0_15], %17 {strides = array<i32>} : memref<8x1xf32, #tpu.memory_space<vmem>>, vector<8x1xf32>,
      %cst_16 = arith.constant 0.000000e+00 : f32
      %19 = vector.broadcast %cst_16 : f32 to vector<8x1xf32>
      %c0_17 = arith.constant 0 : index
      %c0_18 = arith.constant 0 : index
      %20 = vector.load %arg6[%c0_17, %c0_18] : memref<8x1xf32, #tpu.memory_space<vmem>>, vector<8x1xf32>
      tpu.vector_store %arg6[%c0_17, %c0_18], %19 {strides = array<i32>} : memref<8x1xf32, #tpu.memory_space<vmem>>, vector<8x1xf32>,
    } else {
    }
    %c0 = arith.constant 0 : index
    %c0_1 = arith.constant 0 : index
    %3 = vector.load %arg2[%c0, %c0_1] : memref<8x256xf32, #tpu.memory_space<vmem>>, vector<8x256xf32>
    %c0_2 = arith.constant 0 : index
    %c0_3 = arith.constant 0 : index
    %4 = vector.load %arg5[%c0_2, %c0_3] : memref<8x1xf32, #tpu.memory_space<vmem>>, vector<8x1xf32>
    %cst = arith.constant dense<0xFF800000> : vector<8xf32>
    %5 = vector.multi_reduction <maximumf>, %3, %cst [1] : vector<8x256xf32> to vector<8xf32>
    %6 = vector.shape_cast %5 : vector<8xf32> to vector<8x1xf32>
    %7 = arith.maximumf %4, %6 : vector<8x1xf32>
    %c0_4 = arith.constant 0 : index
    %c0_5 = arith.constant 0 : index
    %8 = vector.load %arg5[%c0_4, %c0_5] : memref<8x1xf32, #tpu.memory_space<vmem>>, vector<8x1xf32>
    tpu.vector_store %arg5[%c0_4, %c0_5], %7 {strides = array<i32>} : memref<8x1xf32, #tpu.memory_space<vmem>>, vector<8x1xf32>,
    %c0_6 = arith.constant 0 : index
    %c0_7 = arith.constant 0 : index
    %9 = vector.load %arg6[%c0_6, %c0_7] : memref<8x1xf32, #tpu.memory_space<vmem>>, vector<8x1xf32>
    %cst_8 = arith.constant dense<0.000000e+00> : vector<8xf32>
    %10 = vector.multi_reduction <add>, %3, %cst_8 [1] : vector<8x256xf32> to vector<8xf32>
    %11 = vector.shape_cast %10 : vector<8xf32> to vector<8x1xf32>
    %12 = arith.addf %9, %11 : vector<8x1xf32>
    %c0_9 = arith.constant 0 : index
    %c0_10 = arith.constant 0 : index
    %13 = vector.load %arg6[%c0_9, %c0_10] : memref<8x1xf32, #tpu.memory_space<vmem>>, vector<8x1xf32>
    tpu.vector_store %arg6[%c0_9, %c0_10], %12 {strides = array<i32>} : memref<8x1xf32, #tpu.memory_space<vmem>>, vector<8x1xf32>,
    %c0_i32_11 = arith.constant 0 : i32
    %14 = arith.cmpi eq, %arg1, %c0_i32_11 : i32
    %15 = arith.extui %14 : i1 to i32
    %c0_i32_12 = arith.constant 0 : i32
    %16 = arith.cmpi ne, %15, %c0_i32_12 : i32
    scf.if %16 {
      %c0_13 = arith.constant 0 : index
      %c0_14 = arith.constant 0 : index
      %17 = vector.load %arg5[%c0_13, %c0_14] : memref<8x1xf32, #tpu.memory_space<vmem>>, vector<8x1xf32>
      %c0_15 = arith.constant 0 : index
      %c0_16 = arith.constant 0 : index
      %18 = vector.load %arg3[%c0_15, %c0_16] : memref<8x1xf32, #tpu.memory_space<vmem>>, vector<8x1xf32>
      tpu.vector_store %arg3[%c0_15, %c0_16], %17 {strides = array<i32>} : memref<8x1xf32, #tpu.memory_space<vmem>>, vector<8x1xf32>,
      %c0_17 = arith.constant 0 : index
      %c0_18 = arith.constant 0 : index
      %19 = vector.load %arg6[%c0_17, %c0_18] : memref<8x1xf32, #tpu.memory_space<vmem>>, vector<8x1xf32>
      %cst_19 = arith.constant 3.906250e-03 : f32
      %20 = vector.broadcast %cst_19 : f32 to vector<8x1xf32>
      %21 = arith.mulf %19, %20 : vector<8x1xf32>
      %c0_20 = arith.constant 0 : index
      %c0_21 = arith.constant 0 : index
      %22 = vector.load %arg4[%c0_20, %c0_21] : memref<8x1xf32, #tpu.memory_space<vmem>>, vector<8x1xf32>
      tpu.vector_store %arg4[%c0_20, %c0_21], %21 {strides = array<i32>} : memref<8x1xf32, #tpu.memory_space<vmem>>, vector<8x1xf32>,
    } else {
    }
    return
  }
  func.func @transform_0(%arg0: i32, %arg1: i32) -> (i32, i32) {
    %c0_i32 = arith.constant 0 : i32
    return %arg0, %arg1 : i32, i32
  }
  func.func @transform_1(%arg0: i32, %arg1: i32) -> (i32, i32) {
    %c0_i32 = arith.constant 0 : i32
    %c0_i32_0 = arith.constant 0 : i32
    return %arg0, %c0_i32 : i32, i32
  }
  func.func @transform_2(%arg0: i32, %arg1: i32) -> (i32, i32) {
    %c0_i32 = arith.constant 0 : i32
    %c0_i32_0 = arith.constant 0 : i32
    return %arg0, %c0_i32 : i32, i32
  }
}

</mosaic_0001>

<llo_original>
// kernel: tpu_custom_call.1
$region0: #{tpu_custom_call.1}
  #allocation0 [shape = 'u32[]', space=smem, size = 0x4, offset = 0x4, fixed_abs, tag = 'smem constant byte address 0x4 - core index']
  #allocation1 [shape = 'u32[72,128]{1,0:T(1,128)}', space=vmem, size = 0x9000, scoped, tag = 'internal scratch']
  #allocation2 [shape = 'f32[8,1]{1,0:T(8,128)}', space=vmem, size = 0x1000, scoped, tag = 'scratch operand']
  #allocation3 [shape = 'f32[8,1]{1,0:T(8,128)}', space=vmem, size = 0x1000, scoped, tag = 'scratch operand']
  %s0 = inlined_call_operand.hbm [shape: f32[8,256], index: 0, kind: input, shape index: {}]
  %s1 = inlined_call_operand.vmem [shape: f32[8,1], index: 1, kind: output, shape index: {0}]
  %s2 = inlined_call_operand.vmem [shape: f32[8,1], index: 2, kind: output, shape index: {1}]
  %3 = xla_tuple %s1, %s2
  %s4 = sld [smem:[#allocation0]]
  $region34: #{tpu_custom_call.1} parent=0
    _
  %s6 = ssub.s32 1, %s4
  %s7 = scalar_select 0, %s6, %s4
  $region1: #{tpu_custom_call.1} parent=0
    #allocation4 [shape = 'u8[8192]{0}', space=vmem, size = 0x2000, scoped, tag = 'input window, operand 0, single buffered']
    #allocation5 [shape = 's32[1]{0}', space=sflag, size = 0x4, scoped, tag = 'scoped memory for tpu_custom_call.1']
    %8 = vsyncpa [#allocation5], 0
    // Predicated region
    $region2: #{tpu_custom_call.1} parent=1 // pred_check
      _
    $region3: #{tpu_custom_call.1} parent=1 // pred_check_branch
      %10 = sbr.rel (0) target = $region5
    $region4: #{tpu_custom_call.1} parent=1 // pred_region
      %12 = vsyncadd [#allocation5], 0
      %s14 = sshll.u32 %s0, 4
      %s15 = int_to_ptr.hbm [resolvable:$true] %s14
      %s16 = sshll.u32 [#allocation4], 4
      %s17 = int_to_ptr.vmem [resolvable:$true] %s16
      %19 = dma.hbm_to_vmem [thread:$0]  %s15, 256, %s17, [#allocation5]
    $region5: #{tpu_custom_call.1} parent=1 // pred_fallthru
      _
    // Predicated region
    $region6: #{tpu_custom_call.1} parent=1 // pred_check
      _
    $region7: #{tpu_custom_call.1} parent=1 // pred_check_branch
      %21 = sbr.rel (0) target = $region9
    $region8: #{tpu_custom_call.1} parent=1 // pred_region
      %23 = dma.done [#allocation5], 256
    $region9: #{tpu_custom_call.1} parent=1 // pred_fallthru
      _
    %p24 = scmp.eq.s32.totalorder 0, 0
    // Predicated region
    $region10: #{tpu_custom_call.1} parent=1 // pred_check
      %p25 = pneg %p24
    $region11: #{tpu_custom_call.1} parent=1 // pred_check_branch
      %27 = sbr.rel (%p25) target = $region13
    $region12: #{tpu_custom_call.1} parent=1 // pred_region
      %vm28 = vcmask 7168
      %29 = vst.msk [vmem:[#allocation2] sm:$0xff] %vm28, -inf
      %30 = vst.msk [vmem:[#allocation3] sm:$0xff] %vm28, 0.0
    $region13: #{tpu_custom_call.1} parent=1 // pred_fallthru
      _
    %v31 = vld [vmem:[#allocation4] sm:$0xff]
    %v32 = vld [vmem:[#allocation4 + $0x8] sm:$0xff]
    %v33 = vld [vmem:[#allocation2] sm:$0xff]
    %v34 = vmax.f32 %v31, %v32
    %35 = vmax.xlane.f32.xlu0 %v34
    %v36 = vpop.xlane.xlu0 %35
    %v37 = vmax.f32 %v33, %v36
    %vm38 = vcmask 7168
    %39 = vst.msk [vmem:[#allocation2] sm:$0xff] %vm38, %v37
    %v40 = vld [vmem:[#allocation3] sm:$0xff]
    %v41 = vadd.f32 %v31, %v32
    %42 = vadd.xlane.f32.xlu0 %v41
    %v43 = vpop.xlane.xlu0 %42
    %v44 = vadd.f32 %v40, %v43
    %45 = vst.msk [vmem:[#allocation3] sm:$0xff] %vm38, %v44
    // Predicated region
    $region14: #{tpu_custom_call.1} parent=1 // pred_check
      %p46 = pneg %p24
    $region15: #{tpu_custom_call.1} parent=1 // pred_check_branch
      %48 = sbr.rel (%p46) target = $region17
    $region16: #{tpu_custom_call.1} parent=1 // pred_region
      %v49 = vld [vmem:[#allocation2] sm:$0xff]
      %50 = vst.msk [vmem:[%s1] sm:$0xff] %vm38, %v49
      %v51 = vld [vmem:[#allocation3] sm:$0xff]
      %v52 = vmul.f32 %v51, 0.00390625
      %53 = vst.msk [vmem:[%s2] sm:$0xff] %vm38, %v52
    $region17: #{tpu_custom_call.1} parent=1 // pred_fallthru
      _
    // Predicated region
    $region18: #{tpu_custom_call.1} parent=1 // pred_check
      _
    $region19: #{tpu_custom_call.1} parent=1 // pred_check_branch
      %55 = sbr.rel (0) target = $region21
    $region20: #{tpu_custom_call.1} parent=1 // pred_region
      _
    $region21: #{tpu_custom_call.1} parent=1 // pred_fallthru
      _
    // Predicated region
    $region22: #{tpu_custom_call.1} parent=1 // pred_check
      _
    $region23: #{tpu_custom_call.1} parent=1 // pred_check_branch
      %57 = sbr.rel (0) target = $region25
    $region24: #{tpu_custom_call.1} parent=1 // pred_region
      _
    $region25: #{tpu_custom_call.1} parent=1 // pred_fallthru
      _
    // Predicated region
    $region26: #{tpu_custom_call.1} parent=1 // pred_check
      _
    $region27: #{tpu_custom_call.1} parent=1 // pred_check_branch
      %59 = sbr.rel (0) target = $region29
    $region28: #{tpu_custom_call.1} parent=1 // pred_region
      _
    $region29: #{tpu_custom_call.1} parent=1 // pred_fallthru
      _
    // Predicated region
    $region30: #{tpu_custom_call.1} parent=1 // pred_check
      _
    $region31: #{tpu_custom_call.1} parent=1 // pred_check_branch
      %61 = sbr.rel (0) target = $region33
    $region32: #{tpu_custom_call.1} parent=1 // pred_region
      _
    $region33: #{tpu_custom_call.1} parent=1 // pred_fallthru
      _
    %62 = vsyncpa [#allocation5], 1

</llo_original>
